<compile_context>
chip_gen: v6e
topology: v6e:2x2x1
jax: 0.10.0
libtpu: 0.0.40
codegen_flags: <defaults>
</compile_context>

<pallas_src>
import functools

import jax
import jax.numpy as jnp
import numpy as np
from jax.experimental import pallas as pl
from jax.experimental.pallas import tpu as pltpu


def _round_up(a, b):
    return (a + b - 1) // b * b


def _sublane_align(dtype):
    # 8 sublanes x 32 bit: f32 -> 8 rows/vreg, bf16 -> 16, int8/fp8 -> 32.
    return max(8, 32 // jnp.dtype(dtype).itemsize)


def _gdrop_kernel(x_ref, r_ref, o_ref):
    """One (tile_m, tile_l) tile of y = x * rnd.

    x_ref: (tile_m, tile_l) in x.dtype; r_ref: (tile_m, 1) f32, broadcast
    along the lane axis.  Product is computed in f32 and cast on store.
    """
    o_ref[...] = (x_ref[...] * r_ref[...]).astype(o_ref.dtype)


def _build_multiplier(x, key, mode, strength, axes, normalize):
    """O(N*C) multiplier, mirrors the numpy formulas of the torch module (f32)."""
    rnd_shape = tuple(s if ax in axes else 1 for ax, s in enumerate(x.shape))
    if mode == "drop":
        p = 1.0 - strength
        rnd = jax.random.bernoulli(key, p=p, shape=rnd_shape).astype(jnp.float32) / p
    elif mode == "mul":
        rnd = (1.0 + strength) ** jax.random.normal(key, rnd_shape, jnp.float32)
    else:  # 'prop'
        coef = strength * (x.shape[1] ** 0.5)
        rnd = jax.random.normal(key, rnd_shape, jnp.float32) * coef + 1.0
    if normalize:
        rnd = rnd / jnp.linalg.norm(rnd)
    return rnd


def generalized_dropout(x, key, *, mode="mul", strength=0.4, axes=(0, 1),
                        normalize=False, deterministic=False,
                        max_tile_m=512, max_tile_l=4096,
                        small_bypass_bytes=4 * 1024 * 1024,
                        alias_output=False):
    """Forward pass of GeneralizedDropOut.  x: [N, C, *spatial]."""
    mode = mode.lower()
    if mode not in ("mul", "drop", "prop"):
        raise ValueError("Invalid GDropLayer mode %s" % mode)
    if deterministic or not strength:
        return x
    if mode == "drop" and strength >= 1.0:
        raise ValueError("mode='drop' requires strength < 1 (p = 1 - strength > 0)")

    axes = (axes,) if isinstance(axes, int) else tuple(axes)
    rnd = _build_multiplier(x, key, mode, strength, axes, normalize)  # f32

    itemsize = jnp.dtype(x.dtype).itemsize
    total_bytes = x.size * itemsize
    # Fallback to XLA's fused broadcast multiply when: the multiplier varies
    # over spatial axes, x has rank < 2, or the tensor is so small that the
    # pallas_call launch overhead would dominate (kernel is HBM-bound anyway).
    # TODO(synk): stream a spatially-varying rnd tile if axes beyond {0,1} are
    # ever needed by the model.
    if (x.ndim < 2 or any(a not in (0, 1) for a in axes)
            or total_bytes <= small_bypass_bytes):
        return (x * rnd).astype(x.dtype)

    N, C = x.shape[0], x.shape[1]
    M = N * C
    L = int(np.prod(x.shape[2:]))

    # Per-(n, c) multiplier column, kept in f32; constant over spatial dims.
    r = jnp.broadcast_to(rnd.reshape(rnd.shape[0], rnd.shape[1]), (N, C))
    r = r.reshape(M, 1).astype(jnp.float32)
    x2 = x.reshape(M, L)

    # ---- chip-aware VMEM limit / tile caps (v7x: 64 MiB vs 128 MiB) -------
    try:
        vmem_cap = int(pltpu.get_tpu_info().vmem_capacity_bytes)
    except Exception:  # conservative default = v7x per-core VMEM
        vmem_cap = 64 * 1024 * 1024
    vmem_limit = vmem_cap // 2

    # ---- lane-dense tiling; ragged edge blocks are handled by Pallas -------
    # (OOB reads padded, OOB writes masked -- fine for elementwise multiply).
    m_align = _sublane_align(x.dtype)
    tile_m = min(max(m_align, max_tile_m // m_align * m_align),
                 _round_up(M, m_align))
    # keep double-buffered in+out tiles within ~75% of the VMEM limit
    budget_l = (int(0.75 * vmem_limit)) // (4 * tile_m * itemsize)
    tile_l_cap = max(128, min(max_tile_l, budget_l // 128 * 128))
    tile_l = min(tile_l_cap, _round_up(L, 128))

    m_blocks = pl.cdiv(M, tile_m)
    l_blocks = pl.cdiv(L, tile_l)

    # Put the axis with more blocks first so it is the one sharded across
    # TensorCores on megacore parts (v7x); M = N*C is often tiny.
    if l_blocks >= m_blocks:
        grid = (l_blocks, m_blocks)
        x_map = lambda j, i: (i, j)
        r_map = lambda j, i: (i, 0)
    else:
        grid = (m_blocks, l_blocks)
        x_map = lambda i, j: (i, j)
        r_map = lambda i, j: (i, 0)

    out = pl.pallas_call(
        _gdrop_kernel,
        out_shape=jax.ShapeDtypeStruct((M, L), x.dtype),
        grid_spec=pltpu.PrefetchScalarGridSpec(
            num_scalar_prefetch=0,
            grid=grid,
            in_specs=[
                pl.BlockSpec((tile_m, tile_l), x_map),   # x tile
                pl.BlockSpec((tile_m, 1), r_map),        # rnd column (f32)
            ],
            out_specs=pl.BlockSpec((tile_m, tile_l), x_map),
        ),
        compiler_params=pltpu.CompilerParams(
            dimension_semantics=("parallel", "parallel"),
            vmem_limit_bytes=int(vmem_limit),
        ),
        cost_estimate=pl.CostEstimate(
            flops=M * L,
            transcendentals=0,
            bytes_accessed=2 * M * L * itemsize + M * 4,
        ),
        # Only effective if x is donated at the jit boundary; saves an output
        # allocation, not HBM traffic.
        input_output_aliases=({0: 0} if alias_output else {}),
    )(x2, r)

    return out.reshape(x.shape)


if __name__ == "__main__":
    # FutureGAN discriminator-style 5-D input: [N, C, D, H, W].
    N, C, D, H, W = 2, 4, 8, 16, 16
    STRENGTH = 0.4

    key = jax.random.PRNGKey(0)
    k_x, k_rnd = jax.random.split(key)
    x = jax.random.normal(k_x, (N, C, D, H, W), jnp.float32)
    rnd_shape = (N, C, 1, 1, 1)

    # --- mode='mul' (module default), forcing the Pallas path (the demo
    # tensor is tiny, so the default small-input bypass would skip it). ---
    run_mul = jax.jit(functools.partial(
        generalized_dropout, mode="mul", strength=STRENGTH,
        small_bypass_bytes=0))
    y = jax.block_until_ready(run_mul(x, k_rnd))
    rnd_ref = (1.0 + STRENGTH) ** jax.random.normal(k_rnd, rnd_shape, jnp.float32)
    np.testing.assert_allclose(np.asarray(y), np.asarray(x * rnd_ref),
                               rtol=1e-6, atol=1e-6)

    # --- mode='drop', Pallas path ---
    run_drop = jax.jit(functools.partial(
        generalized_dropout, mode="drop", strength=STRENGTH,
        small_bypass_bytes=0))
    y_drop = jax.block_until_ready(run_drop(x, k_rnd))
    p = 1.0 - STRENGTH
    rnd_drop = jax.random.bernoulli(
        k_rnd, p=p, shape=rnd_shape).astype(jnp.float32) / p
    np.testing.assert_allclose(np.asarray(y_drop), np.asarray(x * rnd_drop),
                               rtol=1e-6, atol=1e-6)

    # --- default small-input bypass (plain JAX fused multiply) agrees ---
    run_bypass = jax.jit(functools.partial(
        generalized_dropout, mode="mul", strength=STRENGTH))
    y_bypass = jax.block_until_ready(run_bypass(x, k_rnd))
    np.testing.assert_allclose(np.asarray(y_bypass), np.asarray(x * rnd_ref),
                               rtol=1e-6, atol=1e-6)

    # --- deterministic path returns the input unchanged ---
    y_det = generalized_dropout(x, k_rnd, deterministic=True)
    np.testing.assert_array_equal(np.asarray(y_det), np.asarray(x))

    print("KERNEL_OK")
</pallas_src>

<mosaic_0001>
module attributes {stable_mosaic.version = 11 : i64} {
  func.func @_gdrop_kernel(%arg0: i32, %arg1: i32, %arg2: memref<8x2048xf32, #tpu.memory_space<vmem>>, %arg3: memref<8x1xf32, #tpu.memory_space<vmem>>, %arg4: memref<8x2048xf32, #tpu.memory_space<vmem>>) attributes {dimension_semantics = [#tpu.dimension_semantics<parallel>, #tpu.dimension_semantics<parallel>], iteration_bounds = array<i64: 1, 1>, scalar_prefetch = 0 : i64, scratch_operands = 0 : i64, tpu.core_type = #tpu.core_type<tc>, window_params = [{transform_indices = @transform_0, window_bounds = array<i64: 8, 2048>}, {transform_indices = @transform_1, window_bounds = array<i64: 8, 1>}, {transform_indices = @transform_2, window_bounds = array<i64: 8, 2048>}]} {
    %c0 = arith.constant 0 : index
    %c0_0 = arith.constant 0 : index
    %0 = vector.load %arg2[%c0, %c0_0] : memref<8x2048xf32, #tpu.memory_space<vmem>>, vector<8x2048xf32>
    %c0_1 = arith.constant 0 : index
    %c0_2 = arith.constant 0 : index
    %1 = vector.load %arg3[%c0_1, %c0_2] : memref<8x1xf32, #tpu.memory_space<vmem>>, vector<8x1xf32>
    %2 = vector.broadcast %1 : vector<8x1xf32> to vector<8x2048xf32>
    %3 = arith.mulf %0, %2 : vector<8x2048xf32>
    %c0_3 = arith.constant 0 : index
    %c0_4 = arith.constant 0 : index
    %4 = vector.load %arg4[%c0_3, %c0_4] : memref<8x2048xf32, #tpu.memory_space<vmem>>, vector<8x2048xf32>
    tpu.vector_store %arg4[%c0_3, %c0_4], %3 {strides = array<i32>} : memref<8x2048xf32, #tpu.memory_space<vmem>>, vector<8x2048xf32>,
    return
  }
  func.func @transform_0(%arg0: i32, %arg1: i32) -> (i32, i32) {
    %c0_i32 = arith.constant 0 : i32
    return %arg1, %arg0 : i32, i32
  }
  func.func @transform_1(%arg0: i32, %arg1: i32) -> (i32, i32) {
    %c0_i32 = arith.constant 0 : i32
    %c0_i32_0 = arith.constant 0 : i32
    return %arg1, %c0_i32 : i32, i32
  }
  func.func @transform_2(%arg0: i32, %arg1: i32) -> (i32, i32) {
    %c0_i32 = arith.constant 0 : i32
    return %arg1, %arg0 : i32, i32
  }
}

</mosaic_0001>

<llo_original>
// kernel: generalized_dropout.1
$region0: #{generalized_dropout.1}
  #allocation0 [shape = 'u32[]', space=smem, size = 0x4, offset = 0x4, fixed_abs, tag = 'smem constant byte address 0x4 - core index']
  #allocation1 [shape = 'u32[144,128]{1,0:T(1,128)}', space=vmem, size = 0x12000, scoped, tag = 'internal scratch']
  %s0 = inlined_call_operand.vmem [shape: f32[8,2048], index: 0, kind: input, shape index: {}]
  %s1 = inlined_call_operand.vmem [shape: f32[8,1], index: 1, kind: input, shape index: {}]
  %s2 = inlined_call_operand.vmem [shape: f32[8,2048], index: 2, kind: output, shape index: {}]
  %s3 = sld [smem:[#allocation0]]
  $region18: #{generalized_dropout.1} parent=0
    _
  %s5 = ssub.s32 1, %s3
  %s6 = scalar_select 0, %s5, %s3
  // Predicated region
  $region2: #{generalized_dropout.1} parent=0 // pred_check
    _
  $region3: #{generalized_dropout.1} parent=0 // pred_check_branch
    %8 = sbr.rel (0) target = $region5
  $region4: #{generalized_dropout.1} parent=0 // pred_region
    _
  $region5: #{generalized_dropout.1} parent=0 // pred_fallthru
    _
  // Predicated region
  $region6: #{generalized_dropout.1} parent=0 // pred_check
    _
  $region7: #{generalized_dropout.1} parent=0 // pred_check_branch
    %10 = sbr.rel (0) target = $region9
  $region8: #{generalized_dropout.1} parent=0 // pred_region
    _
  $region9: #{generalized_dropout.1} parent=0 // pred_fallthru
    _
  %v11 = vld [vmem:[%s0] sm:$0xff]
  %v12 = vld [vmem:[%s0 + $0x8] sm:$0xff]
  %v13 = vld [vmem:[%s0 + $0x10] sm:$0xff]
  %v14 = vld [vmem:[%s0 + $0x18] sm:$0xff]
  %v15 = vld [vmem:[%s0 + $0x20] sm:$0xff]
  %v16 = vld [vmem:[%s0 + $0x28] sm:$0xff]
  %v17 = vld [vmem:[%s0 + $0x30] sm:$0xff]
  %v18 = vld [vmem:[%s0 + $0x38] sm:$0xff]
  %v19 = vld [vmem:[%s0 + $0x40] sm:$0xff]
  %v20 = vld [vmem:[%s0 + $0x48] sm:$0xff]
  %v21 = vld [vmem:[%s0 + $0x50] sm:$0xff]
  %v22 = vld [vmem:[%s0 + $0x58] sm:$0xff]
  %v23 = vld [vmem:[%s0 + $0x60] sm:$0xff]
  %v24 = vld [vmem:[%s0 + $0x68] sm:$0xff]
  %v25 = vld [vmem:[%s0 + $0x70] sm:$0xff]
  %v26 = vld [vmem:[%s0 + $0x78] sm:$0xff]
  %v27 = vld [vmem:[%s1] sm:$0xff]
  %29 = vset.pattern.permute.xlu0 0
  %30 = vperm.xlu0 %29, %v27
  %v31 = vpop.permute.xlu0 %30
  %v33 = vmul.f32 %v11, %v31
  %v34 = vmul.f32 %v12, %v31
  %v35 = vmul.f32 %v13, %v31
  %v36 = vmul.f32 %v14, %v31
  %v37 = vmul.f32 %v15, %v31
  %v38 = vmul.f32 %v16, %v31
  %v39 = vmul.f32 %v17, %v31
  %v40 = vmul.f32 %v18, %v31
  %v41 = vmul.f32 %v19, %v31
  %v42 = vmul.f32 %v20, %v31
  %v43 = vmul.f32 %v21, %v31
  %v44 = vmul.f32 %v22, %v31
  %v45 = vmul.f32 %v23, %v31
  %v46 = vmul.f32 %v24, %v31
  %v47 = vmul.f32 %v25, %v31
  %v48 = vmul.f32 %v26, %v31
  %49 = vst [vmem:[%s2] sm:$0xff] %v33
  %50 = vst [vmem:[%s2 + $0x8] sm:$0xff] %v34
  %51 = vst [vmem:[%s2 + $0x10] sm:$0xff] %v35
  %52 = vst [vmem:[%s2 + $0x18] sm:$0xff] %v36
  %53 = vst [vmem:[%s2 + $0x20] sm:$0xff] %v37
  %54 = vst [vmem:[%s2 + $0x28] sm:$0xff] %v38
  %55 = vst [vmem:[%s2 + $0x30] sm:$0xff] %v39
  %56 = vst [vmem:[%s2 + $0x38] sm:$0xff] %v40
  %57 = vst [vmem:[%s2 + $0x40] sm:$0xff] %v41
  %58 = vst [vmem:[%s2 + $0x48] sm:$0xff] %v42
  %59 = vst [vmem:[%s2 + $0x50] sm:$0xff] %v43
  %60 = vst [vmem:[%s2 + $0x58] sm:$0xff] %v44
  %61 = vst [vmem:[%s2 + $0x60] sm:$0xff] %v45
  %62 = vst [vmem:[%s2 + $0x68] sm:$0xff] %v46
  %63 = vst [vmem:[%s2 + $0x70] sm:$0xff] %v47
  %64 = vst [vmem:[%s2 + $0x78] sm:$0xff] %v48
  // Predicated region
  $region10: #{generalized_dropout.1} parent=0 // pred_check
    _
  $region11: #{generalized_dropout.1} parent=0 // pred_check_branch
    %66 = sbr.rel (0) target = $region13
  $region12: #{generalized_dropout.1} parent=0 // pred_region
    _
  $region13: #{generalized_dropout.1} parent=0 // pred_fallthru
    _
  // Predicated region
  $region14: #{generalized_dropout.1} parent=0 // pred_check
    _
  $region15: #{generalized_dropout.1} parent=0 // pred_check_branch
    %68 = sbr.rel (0) target = $region17
  $region16: #{generalized_dropout.1} parent=0 // pred_region
    _
  $region17: #{generalized_dropout.1} parent=0 // pred_fallthru
    _

</llo_original>
